<compile_context>
chip_gen: v7x
topology: tpu7x:2x2x1
jax: 0.10.0
libtpu: 0.0.40
codegen_flags: <defaults>
</compile_context>

<pallas_src>
import functools

import jax
import jax.numpy as jnp
from jax import lax
from jax.experimental import pallas as pl
from jax.experimental.pallas import tpu as pltpu


def _topk_pack_kernel(score_ref, rats_ref, outf_ref, outi_ref, *,
                      num_neg, out_w):
    score = score_ref[...]          # (TB, P) f32   G[user, idx_item]
    rats = rats_ref[...]            # (TB, P) f32   <U[user], V[idx_item]>
    tb, p = score.shape

    diff = score - rats             # (TB, P)

    # Iterative descending top-k over the pool axis (k = num_neg, small/static).
    # Tie-break = first (lowest) pool index, matching lax.top_k / torch.topk.
    pool_iota = lax.broadcasted_iota(jnp.int32, (tb, p), 1)
    neg_inf = jnp.float32(-jnp.inf)
    rv_cols, ridx_cols = [], []
    d = diff
    for _ in range(num_neg):
        m = jnp.max(d, axis=-1, keepdims=True)                      # (TB, 1)
        is_max = d == m
        first = jnp.min(jnp.where(is_max, pool_iota, p),
                        axis=-1, keepdims=True)                     # (TB, 1)
        rv_cols.append(m)
        ridx_cols.append(first)
        d = jnp.where(pool_iota == first, neg_inf, d)

    rv = jnp.concatenate(rv_cols, axis=-1)                          # (TB, K)
    ridx = jnp.concatenate(ridx_cols, axis=-1).astype(jnp.int32)    # (TB, K)

    # Lane-dense packed outputs (out_w is a multiple of 128): whole-ref,
    # unmasked stores / full-width writeback DMAs.
    k = num_neg
    parts_f = [rv, jnp.exp(rv)]                 # [r_v | exp(r_v) | 0-pad]
    if out_w > 2 * k:
        parts_f.append(jnp.zeros((tb, out_w - 2 * k), jnp.float32))
    outf_ref[...] = jnp.concatenate(parts_f, axis=-1)

    parts_i = [ridx]                            # [r_idx | 0-pad]
    if out_w > k:
        parts_i.append(jnp.zeros((tb, out_w - k), jnp.int32))
    outi_ref[...] = jnp.concatenate(parts_i, axis=-1)


def _pick_tile(batch):
    for cand in (512, 256, 128, 64, 32, 16, 8):
        if batch % cand == 0:
            return cand
    return batch


def gain_sampler_forward(G, user_emb, item_emb, user_id, idx_item, num_neg,
                         tb=None):
    """Reproduces gain_sampler.forward; returns (neg_item_ids, exp(r_v), G_new)."""
    B, P = idx_item.shape
    num_users, num_items = G.shape
    assert num_neg <= P, "top-k k must not exceed pool_size"
    assert num_neg <= B, "torch repeat+gather output semantics need num_neg <= batch"

    if tb is None:
        tb = _pick_tile(B)
    assert B % tb == 0 and (tb == B or tb % 8 == 0)

    # ---- plain-JAX glue (cheap gathers + MXU contraction) ----
    g_rows = G[user_id]                                             # (B, I)
    score_item = jnp.take_along_axis(g_rows, idx_item, axis=1)      # (B, P)
    # model.inference(user, items) for a matrix-factorization model; XLA runs
    # this on the MXU and we avoid shipping a lane-sparse (B, P, E) tensor
    # into the kernel.
    rats = jnp.einsum("be,bpe->bp", user_emb[user_id], item_emb[idx_item],
                      preferred_element_type=jnp.float32)           # (B, P)

    # ---- Pallas kernel: diff + top-k + exp + lane-dense packing ----
    out_w = max(128, ((2 * num_neg + 127) // 128) * 128)
    kernel = functools.partial(_topk_pack_kernel, num_neg=num_neg, out_w=out_w)

    packed_f, packed_i = pl.pallas_call(
        kernel,
        out_shape=(jax.ShapeDtypeStruct((B, out_w), jnp.float32),
                   jax.ShapeDtypeStruct((B, out_w), jnp.int32)),
        grid_spec=pltpu.PrefetchScalarGridSpec(
            num_scalar_prefetch=0,
            grid=(B // tb,),
            in_specs=[pl.BlockSpec((tb, P), lambda i: (i, 0)),
                      pl.BlockSpec((tb, P), lambda i: (i, 0))],
            out_specs=[pl.BlockSpec((tb, out_w), lambda i: (i, 0)),
                       pl.BlockSpec((tb, out_w), lambda i: (i, 0))]),
        compiler_params=pltpu.CompilerParams(
            dimension_semantics=("parallel",)),   # no accumulator across batch
    )(score_item.astype(jnp.float32), rats.astype(jnp.float32))

    r_v = packed_f[:, :num_neg]                  # (B, K)
    exp_rv = packed_f[:, num_neg:2 * num_neg]    # (B, K)
    r_idx = packed_i[:, :num_neg]                # (B, K) pool positions

    # Exact torch semantics of
    #   gather(idx_item.repeat(B,1,1), 2, r_idx.unsqueeze(-1)).squeeze(-1)
    # i.e. neg_items[i, j] = idx_item[j, r_idx[i, j]]   (needs num_neg <= B).
    idx_sub = jnp.broadcast_to(idx_item[None, :num_neg, :], (B, num_neg, P))
    neg_items = jnp.take_along_axis(idx_sub, r_idx[:, :, None], axis=2)[..., 0]

    # State update: G[user_id, :] = G[user_id, :].scatter(1, r_idx, r_v).
    # (For duplicate user_ids the winning row is unspecified, matching torch's
    #  advanced-index in-place assignment.)
    g_rows_new = g_rows.at[jnp.arange(B)[:, None], r_idx].set(r_v)
    G_new = G.at[user_id].set(g_rows_new)

    return neg_items, exp_rv, G_new


if __name__ == "__main__":
    num_users, num_items = 16, 64
    emb_dim = 32
    pool_size = 16
    num_neg = 4
    batch = 8

    key = jax.random.PRNGKey(0)
    k_uid, k_idx, k_u, k_v = jax.random.split(key, 4)

    # Deterministic synthetic parameters / state.
    G = jnp.zeros((num_users, num_items), dtype=jnp.float32)        # module init
    user_emb = 0.1 * jax.random.normal(k_u, (num_users, emb_dim), jnp.float32)
    item_emb = 0.1 * jax.random.normal(k_v, (num_items, emb_dim), jnp.float32)

    user_id = jax.random.randint(k_uid, (batch,), 0, num_users, dtype=jnp.int32)
    # torch.randint(0, num_items, (batch, pool_size)) done in plain-JAX glue:
    idx_item = jax.random.randint(k_idx, (batch, pool_size), 0, num_items,
                                  dtype=jnp.int32)

    neg_items, exp_rv, G_new = gain_sampler_forward(
        G, user_emb, item_emb, user_id, idx_item, num_neg)
    jax.block_until_ready((neg_items, exp_rv, G_new))

    # Pure-JAX reference check of the full forward.
    score_ref = jnp.take_along_axis(G[user_id], idx_item, axis=1)
    rats_ref = jnp.einsum("be,bpe->bp", user_emb[user_id], item_emb[idx_item])
    rv_ref, ridx_ref = lax.top_k(score_ref - rats_ref, num_neg)
    idx_sub = jnp.broadcast_to(idx_item[None, :num_neg, :],
                               (batch, num_neg, pool_size))
    neg_ref = jnp.take_along_axis(idx_sub, ridx_ref[:, :, None], axis=2)[..., 0]
    g_rows_ref = G[user_id].at[jnp.arange(batch)[:, None], ridx_ref].set(rv_ref)
    G_ref = G.at[user_id].set(g_rows_ref)

    assert jnp.allclose(exp_rv, jnp.exp(rv_ref), rtol=1e-5, atol=1e-6)
    assert jnp.array_equal(neg_items, neg_ref)
    assert jnp.allclose(G_new, G_ref, rtol=1e-5, atol=1e-6)

    print("KERNEL_OK")
</pallas_src>

<mosaic_0001>
module attributes {stable_mosaic.version = 11 : i64} {
  func.func @_topk_pack_kernel(%arg0: i32, %arg1: memref<8x16xf32, #tpu.memory_space<vmem>>, %arg2: memref<8x16xf32, #tpu.memory_space<vmem>>, %arg3: memref<8x128xf32, #tpu.memory_space<vmem>>, %arg4: memref<8x128xi32, #tpu.memory_space<vmem>>) attributes {dimension_semantics = [#tpu.dimension_semantics<parallel>], iteration_bounds = array<i64: 1>, scalar_prefetch = 0 : i64, scratch_operands = 0 : i64, tpu.core_type = #tpu.core_type<tc>, window_params = [{transform_indices = @transform_0, window_bounds = array<i64: 8, 16>}, {transform_indices = @transform_1, window_bounds = array<i64: 8, 16>}, {transform_indices = @transform_2, window_bounds = array<i64: 8, 128>}, {transform_indices = @transform_3, window_bounds = array<i64: 8, 128>}]} {
    %c0 = arith.constant 0 : index
    %c0_0 = arith.constant 0 : index
    %0 = vector.load %arg1[%c0, %c0_0] : memref<8x16xf32, #tpu.memory_space<vmem>>, vector<8x16xf32>
    %c0_1 = arith.constant 0 : index
    %c0_2 = arith.constant 0 : index
    %1 = vector.load %arg2[%c0_1, %c0_2] : memref<8x16xf32, #tpu.memory_space<vmem>>, vector<8x16xf32>
    %2 = arith.subf %0, %1 : vector<8x16xf32>
    %3 = tpu.iota {dimensions = array<i32: 1>} : vector<8x16xi32>
    %cst = arith.constant dense<0xFF800000> : vector<8xf32>
    %4 = vector.multi_reduction <maximumf>, %2, %cst [1] : vector<8x16xf32> to vector<8xf32>
    %5 = vector.shape_cast %4 : vector<8xf32> to vector<8x1xf32>
    %6 = vector.broadcast %5 : vector<8x1xf32> to vector<8x16xf32>
    %7 = arith.cmpf oeq, %2, %6 : vector<8x16xf32>
    %c16_i32 = arith.constant 16 : i32
    %8 = vector.broadcast %c16_i32 : i32 to vector<8x16xi32>
    %9 = arith.select %7, %3, %8 : vector<8x16xi1>, vector<8x16xi32>
    %cst_3 = arith.constant dense<2147483647> : vector<8xi32>
    %10 = vector.multi_reduction <minsi>, %9, %cst_3 [1] : vector<8x16xi32> to vector<8xi32>
    %11 = vector.shape_cast %10 : vector<8xi32> to vector<8x1xi32>
    %12 = vector.broadcast %11 : vector<8x1xi32> to vector<8x16xi32>
    %13 = arith.cmpi eq, %3, %12 : vector<8x16xi32>
    %cst_4 = arith.constant 0xFF800000 : f32
    %14 = vector.broadcast %cst_4 : f32 to vector<8x16xf32>
    %15 = arith.select %13, %14, %2 : vector<8x16xi1>, vector<8x16xf32>
    %cst_5 = arith.constant dense<0xFF800000> : vector<8xf32>
    %16 = vector.multi_reduction <maximumf>, %15, %cst_5 [1] : vector<8x16xf32> to vector<8xf32>
    %17 = vector.shape_cast %16 : vector<8xf32> to vector<8x1xf32>
    %18 = vector.broadcast %17 : vector<8x1xf32> to vector<8x16xf32>
    %19 = arith.cmpf oeq, %15, %18 : vector<8x16xf32>
    %c16_i32_6 = arith.constant 16 : i32
    %20 = vector.broadcast %c16_i32_6 : i32 to vector<8x16xi32>
    %21 = arith.select %19, %3, %20 : vector<8x16xi1>, vector<8x16xi32>
    %cst_7 = arith.constant dense<2147483647> : vector<8xi32>
    %22 = vector.multi_reduction <minsi>, %21, %cst_7 [1] : vector<8x16xi32> to vector<8xi32>
    %23 = vector.shape_cast %22 : vector<8xi32> to vector<8x1xi32>
    %24 = vector.broadcast %23 : vector<8x1xi32> to vector<8x16xi32>
    %25 = arith.cmpi eq, %3, %24 : vector<8x16xi32>
    %cst_8 = arith.constant 0xFF800000 : f32
    %26 = vector.broadcast %cst_8 : f32 to vector<8x16xf32>
    %27 = arith.select %25, %26, %15 : vector<8x16xi1>, vector<8x16xf32>
    %cst_9 = arith.constant dense<0xFF800000> : vector<8xf32>
    %28 = vector.multi_reduction <maximumf>, %27, %cst_9 [1] : vector<8x16xf32> to vector<8xf32>
    %29 = vector.shape_cast %28 : vector<8xf32> to vector<8x1xf32>
    %30 = vector.broadcast %29 : vector<8x1xf32> to vector<8x16xf32>
    %31 = arith.cmpf oeq, %27, %30 : vector<8x16xf32>
    %c16_i32_10 = arith.constant 16 : i32
    %32 = vector.broadcast %c16_i32_10 : i32 to vector<8x16xi32>
    %33 = arith.select %31, %3, %32 : vector<8x16xi1>, vector<8x16xi32>
    %cst_11 = arith.constant dense<2147483647> : vector<8xi32>
    %34 = vector.multi_reduction <minsi>, %33, %cst_11 [1] : vector<8x16xi32> to vector<8xi32>
    %35 = vector.shape_cast %34 : vector<8xi32> to vector<8x1xi32>
    %36 = vector.broadcast %35 : vector<8x1xi32> to vector<8x16xi32>
    %37 = arith.cmpi eq, %3, %36 : vector<8x16xi32>
    %cst_12 = arith.constant 0xFF800000 : f32
    %38 = vector.broadcast %cst_12 : f32 to vector<8x16xf32>
    %39 = arith.select %37, %38, %27 : vector<8x16xi1>, vector<8x16xf32>
    %cst_13 = arith.constant dense<0xFF800000> : vector<8xf32>
    %40 = vector.multi_reduction <maximumf>, %39, %cst_13 [1] : vector<8x16xf32> to vector<8xf32>
    %41 = vector.shape_cast %40 : vector<8xf32> to vector<8x1xf32>
    %42 = vector.broadcast %41 : vector<8x1xf32> to vector<8x16xf32>
    %43 = arith.cmpf oeq, %39, %42 : vector<8x16xf32>
    %c16_i32_14 = arith.constant 16 : i32
    %44 = vector.broadcast %c16_i32_14 : i32 to vector<8x16xi32>
    %45 = arith.select %43, %3, %44 : vector<8x16xi1>, vector<8x16xi32>
    %cst_15 = arith.constant dense<2147483647> : vector<8xi32>
    %46 = vector.multi_reduction <minsi>, %45, %cst_15 [1] : vector<8x16xi32> to vector<8xi32>
    %47 = vector.shape_cast %46 : vector<8xi32> to vector<8x1xi32>
    %48 = tpu.concatenate %5, %17, %29, %41 in 1 : vector<8x1xf32>, vector<8x1xf32>, vector<8x1xf32>, vector<8x1xf32> -> vector<8x4xf32>
    %49 = tpu.concatenate %11, %23, %35, %47 in 1 : vector<8x1xi32>, vector<8x1xi32>, vector<8x1xi32>, vector<8x1xi32> -> vector<8x4xi32>
    %50 = math.exp %48 : vector<8x4xf32>
    %cst_16 = arith.constant 0.000000e+00 : f32
    %51 = vector.broadcast %cst_16 : f32 to vector<8x120xf32>
    %52 = tpu.concatenate %48, %50, %51 in 1 : vector<8x4xf32>, vector<8x4xf32>, vector<8x120xf32> -> vector<8x128xf32>
    %c0_17 = arith.constant 0 : index
    %c0_18 = arith.constant 0 : index
    %53 = vector.load %arg3[%c0_17, %c0_18] : memref<8x128xf32, #tpu.memory_space<vmem>>, vector<8x128xf32>
    tpu.vector_store %arg3[%c0_17, %c0_18], %52 {strides = array<i32>} : memref<8x128xf32, #tpu.memory_space<vmem>>, vector<8x128xf32>,
    %c0_i32 = arith.constant 0 : i32
    %54 = vector.broadcast %c0_i32 : i32 to vector<8x124xi32>
    %55 = tpu.concatenate %49, %54 in 1 : vector<8x4xi32>, vector<8x124xi32> -> vector<8x128xi32>
    %c0_19 = arith.constant 0 : index
    %c0_20 = arith.constant 0 : index
    %56 = vector.load %arg4[%c0_19, %c0_20] : memref<8x128xi32, #tpu.memory_space<vmem>>, vector<8x128xi32>
    tpu.vector_store %arg4[%c0_19, %c0_20], %55 {strides = array<i32>} : memref<8x128xi32, #tpu.memory_space<vmem>>, vector<8x128xi32>,
    return
  }
  func.func @transform_0(%arg0: i32) -> (i32, i32) {
    %c0_i32 = arith.constant 0 : i32
    %c0_i32_0 = arith.constant 0 : i32
    return %arg0, %c0_i32 : i32, i32
  }
  func.func @transform_1(%arg0: i32) -> (i32, i32) {
    %c0_i32 = arith.constant 0 : i32
    %c0_i32_0 = arith.constant 0 : i32
    return %arg0, %c0_i32 : i32, i32
  }
  func.func @transform_2(%arg0: i32) -> (i32, i32) {
    %c0_i32 = arith.constant 0 : i32
    %c0_i32_0 = arith.constant 0 : i32
    return %arg0, %c0_i32 : i32, i32
  }
  func.func @transform_3(%arg0: i32) -> (i32, i32) {
    %c0_i32 = arith.constant 0 : i32
    %c0_i32_0 = arith.constant 0 : i32
    return %arg0, %c0_i32 : i32, i32
  }
}

</mosaic_0001>

<llo_original>
// kernel: tpu_custom_call.1
$region0: #{tpu_custom_call.1}
  #allocation0 [shape = 'u32[]', space=smem, size = 0x4, offset = 0x4, fixed_abs, tag = 'smem constant byte address 0x4 - core index']
  #allocation1 [shape = 'u32[144,128]{1,0:T(1,128)}', space=vmem, size = 0x12000, scoped, tag = 'internal scratch']
  %s0 = inlined_call_operand.hbm [shape: f32[8,16], index: 0, kind: input, shape index: {}]
  %s1 = inlined_call_operand.hbm [shape: f32[8,16], index: 1, kind: input, shape index: {}]
  %s2 = inlined_call_operand.hbm [shape: f32[8,128], index: 2, kind: output, shape index: {0}]
  %s3 = inlined_call_operand.hbm [shape: s32[8,128], index: 3, kind: output, shape index: {1}]
  %4 = xla_tuple %s2, %s3
  %s5 = sld [smem:[#allocation0]]
  $region34: #{tpu_custom_call.1} parent=0
    _
  %s7 = ssub.s32 1, %s5
  %s8 = scalar_select 0, %s7, %s5
  $region1: #{tpu_custom_call.1} parent=0
    #allocation2 [shape = 'u8[4096]{0}', space=vmem, size = 0x1000, scoped, tag = 'input window, operand 0, single buffered']
    #allocation3 [shape = 's32[1]{0}', space=sflag, size = 0x4, scoped, tag = 'scoped memory for tpu_custom_call.1']
    #allocation4 [shape = 's32[1]{0}', space=sflag, size = 0x4, scoped, tag = 'scoped memory for tpu_custom_call.1']
    #allocation5 [shape = 'u8[4096]{0}', space=vmem, size = 0x1000, scoped, tag = 'input window, operand 1, single buffered']
    #allocation6 [shape = 's32[1]{0}', space=sflag, size = 0x4, scoped, tag = 'scoped memory for tpu_custom_call.1']
    #allocation7 [shape = 'u8[4096]{0}', space=vmem, size = 0x1000, scoped, tag = 'output window, operand 0, single buffered']
    #allocation8 [shape = 'u8[4096]{0}', space=vmem, size = 0x1000, scoped, tag = 'output window, operand 1, single buffered']
    #allocation9 [shape = 's32[1]{0}', space=sflag, size = 0x4, scoped, tag = 'scoped memory for tpu_custom_call.1']
    %9 = vsyncpa [#allocation3], 0
    %10 = vsyncpa [#allocation6], 0
    %11 = vsyncpa [#allocation4], 0
    %12 = vsyncpa [#allocation9], 0
    // Predicated region
    $region2: #{tpu_custom_call.1} parent=1 // pred_check
      _
    $region3: #{tpu_custom_call.1} parent=1 // pred_check_branch
      %14 = sbr.rel (0) target = $region5
    $region4: #{tpu_custom_call.1} parent=1 // pred_region
      %s16 = ssub.s32 128, 128
      %17 = vsyncadd [#allocation3], %s16
      %s19 = sshll.u32 [#allocation2], 4
      %s20 = int_to_ptr.vmem [resolvable:$true] %s19
      %22 = dma.hbm_to_vmem [thread:$0]  %s0, 128, %s20, [#allocation3]
    $region5: #{tpu_custom_call.1} parent=1 // pred_fallthru
      _
    // Predicated region
    $region6: #{tpu_custom_call.1} parent=1 // pred_check
      _
    $region7: #{tpu_custom_call.1} parent=1 // pred_check_branch
      %24 = sbr.rel (0) target = $region9
    $region8: #{tpu_custom_call.1} parent=1 // pred_region
      %s26 = ssub.s32 128, 128
      %27 = vsyncadd [#allocation6], %s26
      %s29 = sshll.u32 [#allocation5], 4
      %s30 = int_to_ptr.vmem [resolvable:$true] %s29
      %32 = dma.hbm_to_vmem [thread:$0]  %s1, 128, %s30, [#allocation6]
    $region9: #{tpu_custom_call.1} parent=1 // pred_fallthru
      _
    // Predicated region
    $region10: #{tpu_custom_call.1} parent=1 // pred_check
      _
    $region11: #{tpu_custom_call.1} parent=1 // pred_check_branch
      %34 = sbr.rel (0) target = $region13
    $region12: #{tpu_custom_call.1} parent=1 // pred_region
      %35 = dma.done [#allocation3], 128
    $region13: #{tpu_custom_call.1} parent=1 // pred_fallthru
      _
    // Predicated region
    $region14: #{tpu_custom_call.1} parent=1 // pred_check
      _
    $region15: #{tpu_custom_call.1} parent=1 // pred_check_branch
      %37 = sbr.rel (0) target = $region17
    $region16: #{tpu_custom_call.1} parent=1 // pred_region
      %38 = dma.done [#allocation6], 128
    $region17: #{tpu_custom_call.1} parent=1 // pred_fallthru
      _
    %v39 = vld [vmem:[#allocation2] sm:$0xff]
    %v40 = vld [vmem:[#allocation5] sm:$0xff]
    %v41 = vsub.f32 %v39, %v40
    %v42 = vlaneseq
    %v43 = vand.u32 %v42, 127
    %vm44 = vcmask 130048
    %v45 = vsel %vm44, %v41, -inf
    %46 = vmax.xlane.f32.xlu0 %v45
    %v47 = vpop.xlane.xlu0 %46
    %vm48 = vcmp.eq.f32.partialorder %v41, %v47
    %v49 = vsel %vm48, %v43, 16
    %v50 = vsel %vm44, %v49, 2147483647
    %v51 = vand.u32 %v50, 65535
    %v52 = vshra.s32 %v50, 16
    %v53 = vcvt.s32.f32 %v51
    %v54 = vcvt.s32.f32 %v52
    %55 = vmin.xlane.f32.xlu0 %v54
    %v56 = vpop.xlane.xlu0 %55
    %vm57 = vcmp.eq.f32.partialorder %v54, %v56
    %v58 = vsel %vm57, %v53, inf
    %59 = vmin.xlane.f32.xlu0 %v58
    %v60 = vpop.xlane.xlu0 %59
    %v61 = vcvt.f32.s32 %v60
    %v62 = vcvt.f32.s32 %v56
    %v63 = vshll.u32 %v62, 16
    %v64 = vadd.s32 %v63, %v61
    %vm65 = vcmp.eq.s32.totalorder %v43, %v64
    %v66 = vsel %vm65, -inf, %v41
    %v67 = vsel %vm44, %v66, -inf
    %68 = vmax.xlane.f32.xlu0 %v67
    %v69 = vpop.xlane.xlu0 %68
    %vm70 = vcmp.eq.f32.partialorder %v66, %v69
    %v71 = vsel %vm70, %v43, 16
    %v72 = vsel %vm44, %v71, 2147483647
    %v73 = vand.u32 %v72, 65535
    %v74 = vshra.s32 %v72, 16
    %v75 = vcvt.s32.f32 %v73
    %v76 = vcvt.s32.f32 %v74
    %77 = vmin.xlane.f32.xlu0 %v76
    %v78 = vpop.xlane.xlu0 %77
    %vm79 = vcmp.eq.f32.partialorder %v76, %v78
    %v80 = vsel %vm79, %v75, inf
    %81 = vmin.xlane.f32.xlu0 %v80
    %v82 = vpop.xlane.xlu0 %81
    %v83 = vcvt.f32.s32 %v82
    %v84 = vcvt.f32.s32 %v78
    %v85 = vshll.u32 %v84, 16
    %v86 = vadd.s32 %v85, %v83
    %vm87 = vcmp.eq.s32.totalorder %v43, %v86
    %v88 = vsel %vm87, -inf, %v66
    %v89 = vsel %vm44, %v88, -inf
    %90 = vmax.xlane.f32.xlu0 %v89
    %v91 = vpop.xlane.xlu0 %90
    %vm92 = vcmp.eq.f32.partialorder %v88, %v91
    %v93 = vsel %vm92, %v43, 16
    %v94 = vsel %vm44, %v93, 2147483647
    %v95 = vand.u32 %v94, 65535
    %v96 = vshra.s32 %v94, 16
    %v97 = vcvt.s32.f32 %v95
    %v98 = vcvt.s32.f32 %v96
    %99 = vmin.xlane.f32.xlu0 %v98
    %v100 = vpop.xlane.xlu0 %99
    %vm101 = vcmp.eq.f32.partialorder %v98, %v100
    %v102 = vsel %vm101, %v97, inf
    %103 = vmin.xlane.f32.xlu0 %v102
    %v104 = vpop.xlane.xlu0 %103
    %v105 = vcvt.f32.s32 %v104
    %v106 = vcvt.f32.s32 %v100
    %v107 = vshll.u32 %v106, 16
    %v108 = vadd.s32 %v107, %v105
    %vm109 = vcmp.eq.s32.totalorder %v43, %v108
    %v110 = vsel %vm109, -inf, %v88
    %v111 = vsel %vm44, %v110, -inf
    %112 = vmax.xlane.f32.xlu0 %v111
    %v113 = vpop.xlane.xlu0 %112
    %vm114 = vcmp.eq.f32.partialorder %v110, %v113
    %v115 = vsel %vm114, %v43, 16
    %v116 = vsel %vm44, %v115, 2147483647
    %v117 = vand.u32 %v116, 65535
    %v118 = vshra.s32 %v116, 16
    %v119 = vcvt.s32.f32 %v117
    %v120 = vcvt.s32.f32 %v118
    %121 = vmin.xlane.f32.xlu0 %v120
    %v122 = vpop.xlane.xlu0 %121
    %vm123 = vcmp.eq.f32.partialorder %v120, %v122
    %v124 = vsel %vm123, %v119, inf
    %125 = vmin.xlane.f32.xlu0 %v124
    %v126 = vpop.xlane.xlu0 %125
    %v127 = vcvt.f32.s32 %v126
    %v128 = vcvt.f32.s32 %v122
    %v129 = vshll.u32 %v128, 16
    %v130 = vadd.s32 %v129, %v127
    %vm131 = vcmask 7168
    %v132 = vsel %vm131, %v47, %v69
    %vm133 = vcmask 15360
    %v134 = vsel %vm133, %v132, %v91
    %vm135 = vcmask 23552
    %v136 = vsel %vm135, %v134, %v113
    %v137 = vsel %vm131, %v64, %v86
    %v138 = vsel %vm133, %v137, %v108
    %v139 = vsel %vm135, %v138, %v130
    %v140 = vmul.f32 %v136, 1.442695
    %v141 = vpow.pop %v140
    %143 = vrot.lane.b32.xlu0 %v141, 4
    %v144 = vpop.permute.xlu0 %143
    %vm146 = vcmask 31744
    %v147 = vsel %vm146, %v136, %v144
    %vm148 = vcmask 64512
    %v149 = vsel %vm148, %v147, 0.0
    %150 = vst [vmem:[#allocation7] sm:$0xff] %v149
    %v151 = vsel %vm146, %v139, 0
    %152 = vst [vmem:[#allocation8] sm:$0xff] %v151
    // Predicated region
    $region18: #{tpu_custom_call.1} parent=1 // pred_check
      _
    $region19: #{tpu_custom_call.1} parent=1 // pred_check_branch
      %154 = sbr.rel (0) target = $region21
    $region20: #{tpu_custom_call.1} parent=1 // pred_region
      %s156 = ssub.s32 128, 128
      %157 = vsyncadd [#allocation4], %s156
      %s159 = sshll.u32 [#allocation7], 4
      %s160 = int_to_ptr.vmem [resolvable:$true] %s159
      %162 = dma.vmem_to_hbm [thread:$0]  %s160, 128, %s2, [#allocation4]
    $region21: #{tpu_custom_call.1} parent=1 // pred_fallthru
      _
    // Predicated region
    $region22: #{tpu_custom_call.1} parent=1 // pred_check
      _
    $region23: #{tpu_custom_call.1} parent=1 // pred_check_branch
      %164 = sbr.rel (0) target = $region25
    $region24: #{tpu_custom_call.1} parent=1 // pred_region
      %s166 = ssub.s32 128, 128
      %167 = vsyncadd [#allocation9], %s166
      %s169 = sshll.u32 [#allocation8], 4
      %s170 = int_to_ptr.vmem [resolvable:$true] %s169
      %172 = dma.vmem_to_hbm [thread:$0]  %s170, 128, %s3, [#allocation9]
    $region25: #{tpu_custom_call.1} parent=1 // pred_fallthru
      _
    // Predicated region
    $region26: #{tpu_custom_call.1} parent=1 // pred_check
      _
    $region27: #{tpu_custom_call.1} parent=1 // pred_check_branch
      %174 = sbr.rel (0) target = $region29
    $region28: #{tpu_custom_call.1} parent=1 // pred_region
      %175 = dma.done [#allocation4], 128
    $region29: #{tpu_custom_call.1} parent=1 // pred_fallthru
      _
    // Predicated region
    $region30: #{tpu_custom_call.1} parent=1 // pred_check
      _
    $region31: #{tpu_custom_call.1} parent=1 // pred_check_branch
      %177 = sbr.rel (0) target = $region33
    $region32: #{tpu_custom_call.1} parent=1 // pred_region
      %178 = dma.done [#allocation9], 128
    $region33: #{tpu_custom_call.1} parent=1 // pred_fallthru
      _
    %179 = vsyncpa [#allocation3], 1
    %180 = vsyncpa [#allocation6], 1
    %181 = vsyncpa [#allocation4], 1
    %182 = vsyncpa [#allocation9], 1

</llo_original>
